<compile_context>
chip_gen: v5e
topology: v5e:2x2
jax: 0.10.0
libtpu: 0.0.40
codegen_flags: <defaults>
</compile_context>

<pallas_src>
import functools

import numpy as np
import jax
import jax.numpy as jnp
from jax import lax
from jax.experimental import pallas as pl
from jax.experimental.pallas import tpu as pltpu

BATCH = 2
LATENT = 8
SEQ = 8
VOCAB = 16
EPS = 1e-4  # finite-difference step, same as net_derivative

_SV = SEQ * VOCAB
_ROW0 = max(8, ((BATCH + 7) // 8) * 8)      # x rows padded to a sublane multiple
_NROWS = _ROW0 + 2 * BATCH * LATENT         # [x|pad] ++ xp ++ x_rep  -> 40 rows

# 0/1 per-timestep segment selector, (S, S*V), built ONCE at import time.
_selT_np = np.zeros((SEQ, _SV), np.float32)
for _t in range(SEQ):
    _selT_np[_t, _t * VOCAB:(_t + 1) * VOCAB] = 1.0
_SELT = jnp.asarray(_selT_np)


# ------------------------------ fused kernel ------------------------------- #
def _les_fused_kernel(xcat_ref, w_ref, b_ref, selT_ref,
                      cov_ref, pre_ref, a_ref,
                      *, batch, latent, seq, vocab, row0):
    B, L, S, V = batch, latent, seq, vocab
    SV = S * V
    BL = B * L

    W = w_ref[...]                       # (L, SV)
    bias = b_ref[...]                    # (1, SV)
    selT = selT_ref[...]                 # (S, SV) 0/1 segment selector

    # ---- ONE decoder matmul for base, FD-perturbed and broadcast base points
    dec = jnp.dot(xcat_ref[...], W, preferred_element_type=jnp.float32) + bias  # (40, SV)

    pre = dec[0:B, :]                          # (B, SV)   decoder(x)
    pred_p = dec[row0:row0 + BL, :]            # (BL, SV)  decoder(x[b] + eps*e_i)
    pre_bl = dec[row0 + BL:row0 + 2 * BL, :]   # (BL, SV)  decoder(x[b]) per latent row
    pre_ref[...] = pre

    # ---- finite-difference Jacobian, lane-dense; row b*L+i = dDec/dx_i for batch b
    a_all = (pred_p - pre_bl) * jnp.float32(1.0 / EPS)                          # (BL, SV)
    a_ref[...] = a_all

    # ---- softmax statistics directly on the broadcast rows (no per-batch loop)
    x_max = jnp.max(pre_bl, axis=-1, keepdims=True)        # (BL, 1) row-wise shift
    es = jnp.exp(pre_bl - x_max)                            # (BL, SV)

    # ONE stacked segment contraction: exp sums and <A, exp> numerators together
    contract_in = jnp.concatenate([es, a_all * es], axis=0)                     # (2BL, SV)
    seg = lax.dot_general(contract_in, selT, (((1,), (1,)), ((), ())),
                          preferred_element_type=jnp.float32)                   # (2BL, S)
    # ONE stacked segment -> lane expansion for both quantities
    expd = jnp.dot(seg, selT, preferred_element_type=jnp.float32)               # (2BL, SV)

    seg_sum = jnp.maximum(seg[0:BL, :], 1e-30)              # (BL, S)  guarded
    num_m = seg[BL:, :]                                     # (BL, S)
    seg_sum_flat = jnp.maximum(expd[0:BL, :], 1e-30)        # (BL, SV) guarded
    num_m_flat = expd[BL:, :]                               # (BL, SV)

    # ---- closed-form action of the block-diagonal softmax(+constant) Jacobian
    inv_ss = 1.0 / seg_sum_flat
    s_bl = es * inv_ss                                      # per-(b,t) softmax probs
    m_flat = num_m_flat * inv_ss                            # <A, s> expanded to lanes
    dp = s_bl * (a_all - m_flat)                            # prob rows,     (BL, SV)
    # constant rows in the shifted domain: -m/Z = -num_m * exp(-x_max) / seg_sum^2
    dc = -(num_m * jnp.exp(-x_max)) / (seg_sum * seg_sum)   # constant rows, (BL, S)

    # ---- single fused Gram matmul over [dp | dc]; per-batch cov = diagonal blocks
    gram_in = jnp.concatenate([dp, dc], axis=-1)            # (BL, SV + S)
    gram = lax.dot_general(gram_in, gram_in, (((1,), (1,)), ((), ())),
                           preferred_element_type=jnp.float32)                  # (BL, BL)
    for b in range(B):                                      # store-only unroll (B = 2)
        cov_ref[b, :, :] = gram[b * L:(b + 1) * L, b * L:(b + 1) * L]


# ------------------------------- LES forward ------------------------------- #
def les_forward(x, W, b):
    B, L = x.shape
    SV = W.shape[1]
    S, V = SEQ, VOCAB
    assert SV == S * V and B == BATCH and L == LATENT

    # stacked decoder operand: [x | pad] ++ xp (b-major FD points) ++ x repeated
    xp = (x[:, None, :] + EPS * jnp.eye(L, dtype=x.dtype)[None, :, :]).reshape(B * L, L)
    x_rep = jnp.repeat(x, L, axis=0)                                   # (B*L, L)
    pad = jnp.zeros((_ROW0 - B, L), x.dtype)
    xcat = jnp.concatenate([x, pad, xp, x_rep], axis=0)                # (_NROWS, L)

    kernel = functools.partial(_les_fused_kernel, batch=B, latent=L,
                               seq=S, vocab=V, row0=_ROW0)
    cov, pre_flat, a_flat = pl.pallas_call(
        kernel,
        out_shape=(
            jax.ShapeDtypeStruct((B, L, L), jnp.float32),      # cov
            jax.ShapeDtypeStruct((B, SV), jnp.float32),        # pre_sm (flat)
            jax.ShapeDtypeStruct((B * L, SV), jnp.float32),    # a_omega (flat, lane-dense)
        ),
        grid=(1,),
        in_specs=[
            pl.BlockSpec((_NROWS, L), lambda i: (0, 0)),
            pl.BlockSpec((L, SV), lambda i: (0, 0)),
            pl.BlockSpec((1, SV), lambda i: (0, 0)),
            pl.BlockSpec((S, SV), lambda i: (0, 0)),
        ],
        out_specs=(
            pl.BlockSpec((B, L, L), lambda i: (0, 0, 0)),
            pl.BlockSpec((B, SV), lambda i: (0, 0)),
            pl.BlockSpec((B * L, SV), lambda i: (0, 0)),
        ),
        compiler_params=pltpu.CompilerParams(dimension_semantics=("arbitrary",)),
    )(xcat, W, b.reshape(1, SV), _SELT)

    pre_sm = pre_flat.reshape(B, S, V)
    a_omega = a_flat.reshape(B, L, SV)        # lane-dense layout (PyTorch uses (B, SV, L))

    # cov is symmetric PSD: svdvals(cov) == |eigvalsh(cov)|, and eigvalsh is far cheaper.
    # TODO(synk): eigen/SVD factorization has no Pallas equivalent; done in plain JAX.
    evals = jnp.abs(jnp.linalg.eigvalsh(cov))
    penalty = -0.5 * jnp.sum(jnp.log(jnp.maximum(evals, 1e-8)), axis=1)
    penalty = jnp.nan_to_num(penalty, nan=-1500.0, posinf=-1500.0, neginf=-1500.0)
    return penalty, cov, pre_sm, a_omega


# --------------------------- pure-JAX reference ---------------------------- #
def _cov_reference(pre_sm, a_omega_lane):
    """Dense reference: build SoftMax.jacobian_full explicitly, do the two bmms."""
    B, S, V = pre_sm.shape
    O = V + 1
    a_omega = jnp.transpose(a_omega_lane, (0, 2, 1))          # (B, S*V, L) PyTorch layout
    s = jax.nn.softmax(pre_sm, axis=-1)
    e = jnp.exp(pre_sm)
    Z = jnp.sum(e, axis=-1)
    Jf = jnp.zeros((B, S * O, S * V), jnp.float32)
    for bi in range(B):
        for t in range(S):
            st = s[bi, t]
            blk_p = jnp.diag(st) - jnp.outer(st, st)
            blk_c = (-e[bi, t] / (Z[bi, t] ** 2))[None, :]
            blk = jnp.concatenate([blk_p, blk_c], axis=0)
            Jf = Jf.at[bi, t * O:(t + 1) * O, t * V:(t + 1) * V].set(blk)
    c = jnp.einsum("bij,bjk->bik", Jf, a_omega)
    return jnp.einsum("bji,bjk->bik", c, c)


if __name__ == "__main__":
    key = jax.random.PRNGKey(0)
    kx, kw, kb = jax.random.split(key, 3)
    # deterministic synthetic decoder parameters (linear decoder L -> S*V)
    x = jax.random.normal(kx, (BATCH, LATENT), jnp.float32)
    W = 0.5 * jax.random.normal(kw, (LATENT, SEQ * VOCAB), jnp.float32)
    b = 0.1 * jax.random.normal(kb, (SEQ * VOCAB,), jnp.float32)

    penalty, cov, pre_sm, a_omega = les_forward(x, W, b)
    penalty = jax.block_until_ready(penalty)

    # sanity-check the fused Pallas cov / penalty against the dense pure-JAX reference
    cov_ref = _cov_reference(pre_sm, a_omega)
    svals_ref = jnp.linalg.svd(cov_ref, compute_uv=False)
    penalty_ref = -0.5 * jnp.sum(jnp.log(jnp.maximum(svals_ref, 1e-8)), axis=1)
    penalty_ref = jnp.nan_to_num(penalty_ref, nan=-1500.0, posinf=-1500.0, neginf=-1500.0)

    assert penalty.shape == (BATCH,)
    assert bool(jnp.all(jnp.isfinite(penalty)))
    assert bool(jnp.allclose(cov, cov_ref, rtol=1e-4, atol=1e-4)), "cov mismatch"
    assert bool(jnp.allclose(penalty, penalty_ref, rtol=1e-3, atol=1e-3)), "penalty mismatch"
    print("KERNEL_OK")
</pallas_src>

<mosaic_0001>
module attributes {stable_mosaic.version = 11 : i64} {
  func.func @_les_fused_kernel(%arg0: i32, %arg1: memref<40x8xf32, #tpu.memory_space<vmem>>, %arg2: memref<8x128xf32, #tpu.memory_space<vmem>>, %arg3: memref<1x128xf32, #tpu.memory_space<vmem>>, %arg4: memref<8x128xf32, #tpu.memory_space<vmem>>, %arg5: memref<2x8x8xf32, #tpu.memory_space<vmem>>, %arg6: memref<2x128xf32, #tpu.memory_space<vmem>>, %arg7: memref<16x128xf32, #tpu.memory_space<vmem>>) attributes {dimension_semantics = [#tpu.dimension_semantics<arbitrary>], iteration_bounds = array<i64: 1>, scalar_prefetch = 0 : i64, scratch_operands = 0 : i64, tpu.core_type = #tpu.core_type<tc>, window_params = [{pipeline_mode = #tpu.pipeline_mode<synchronous>, transform_indices = @transform_0, window_bounds = array<i64: 40, 8>}, {pipeline_mode = #tpu.pipeline_mode<synchronous>, transform_indices = @transform_1, window_bounds = array<i64: 8, 128>}, {pipeline_mode = #tpu.pipeline_mode<synchronous>, transform_indices = @transform_2, window_bounds = array<i64: 1, 128>}, {pipeline_mode = #tpu.pipeline_mode<synchronous>, transform_indices = @transform_3, window_bounds = array<i64: 8, 128>}, {pipeline_mode = #tpu.pipeline_mode<synchronous>, transform_indices = @transform_4, window_bounds = array<i64: 2, 8, 8>}, {pipeline_mode = #tpu.pipeline_mode<synchronous>, transform_indices = @transform_5, window_bounds = array<i64: 2, 128>}, {pipeline_mode = #tpu.pipeline_mode<synchronous>, transform_indices = @transform_6, window_bounds = array<i64: 16, 128>}]} {
    %c0 = arith.constant 0 : index
    %c0_0 = arith.constant 0 : index
    %0 = vector.load %arg2[%c0, %c0_0] : memref<8x128xf32, #tpu.memory_space<vmem>>, vector<8x128xf32>
    %c0_1 = arith.constant 0 : index
    %c0_2 = arith.constant 0 : index
    %1 = vector.load %arg3[%c0_1, %c0_2] : memref<1x128xf32, #tpu.memory_space<vmem>>, vector<1x128xf32>
    %c0_3 = arith.constant 0 : index
    %c0_4 = arith.constant 0 : index
    %2 = vector.load %arg4[%c0_3, %c0_4] : memref<8x128xf32, #tpu.memory_space<vmem>>, vector<8x128xf32>
    %c0_5 = arith.constant 0 : index
    %c0_6 = arith.constant 0 : index
    %3 = vector.load %arg1[%c0_5, %c0_6] : memref<40x8xf32, #tpu.memory_space<vmem>>, vector<40x8xf32>
    %cst = arith.constant dense<0.000000e+00> : vector<40x128xf32>
    %4 = tpu.matmul %3, %0, %cst {dimension_numbers = #tpu.dot_dimension_numbers<[1], [0], [0], [1], [0, 0, 1, 1], [], []>} : vector<40x8xf32>, vector<8x128xf32>, vector<40x128xf32> -> vector<40x128xf32>
    %5 = vector.broadcast %1 : vector<1x128xf32> to vector<40x128xf32>
    %6 = arith.addf %4, %5 : vector<40x128xf32>
    %7 = vector.extract_strided_slice %6 {offsets = [0, 0], sizes = [2, 128], strides = [1, 1]} : vector<40x128xf32> to vector<2x128xf32>
    %8 = vector.extract_strided_slice %6 {offsets = [8, 0], sizes = [16, 128], strides = [1, 1]} : vector<40x128xf32> to vector<16x128xf32>
    %9 = vector.extract_strided_slice %6 {offsets = [24, 0], sizes = [16, 128], strides = [1, 1]} : vector<40x128xf32> to vector<16x128xf32>
    %c0_7 = arith.constant 0 : index
    %c0_8 = arith.constant 0 : index
    %10 = vector.load %arg6[%c0_7, %c0_8] : memref<2x128xf32, #tpu.memory_space<vmem>>, vector<2x128xf32>
    tpu.vector_store %arg6[%c0_7, %c0_8], %7 {strides = array<i32>} : memref<2x128xf32, #tpu.memory_space<vmem>>, vector<2x128xf32>,
    %11 = arith.subf %8, %9 : vector<16x128xf32>
    %cst_9 = arith.constant 1.000000e+04 : f32
    %12 = vector.broadcast %cst_9 : f32 to vector<16x128xf32>
    %13 = arith.mulf %11, %12 : vector<16x128xf32>
    %c0_10 = arith.constant 0 : index
    %c0_11 = arith.constant 0 : index
    %14 = vector.load %arg7[%c0_10, %c0_11] : memref<16x128xf32, #tpu.memory_space<vmem>>, vector<16x128xf32>
    tpu.vector_store %arg7[%c0_10, %c0_11], %13 {strides = array<i32>} : memref<16x128xf32, #tpu.memory_space<vmem>>, vector<16x128xf32>,
    %cst_12 = arith.constant dense<0xFF800000> : vector<16xf32>
    %15 = vector.multi_reduction <maximumf>, %9, %cst_12 [1] : vector<16x128xf32> to vector<16xf32>
    %16 = vector.shape_cast %15 : vector<16xf32> to vector<16x1xf32>
    %17 = vector.broadcast %16 : vector<16x1xf32> to vector<16x128xf32>
    %18 = arith.subf %9, %17 : vector<16x128xf32>
    %19 = math.exp %18 : vector<16x128xf32>
    %20 = arith.mulf %13, %19 : vector<16x128xf32>
    %21 = tpu.concatenate %19, %20 in 0 : vector<16x128xf32>, vector<16x128xf32> -> vector<32x128xf32>
    %cst_13 = arith.constant dense<0.000000e+00> : vector<32x8xf32>
    %22 = tpu.matmul %21, %2, %cst_13 {dimension_numbers = #tpu.dot_dimension_numbers<[1], [1], [0], [0], [0, 0, 1, 0], [], []>} : vector<32x128xf32>, vector<8x128xf32>, vector<32x8xf32> -> vector<32x8xf32>
    %cst_14 = arith.constant dense<0.000000e+00> : vector<32x128xf32>
    %23 = tpu.matmul %22, %2, %cst_14 {dimension_numbers = #tpu.dot_dimension_numbers<[1], [0], [0], [1], [0, 0, 1, 1], [], []>} : vector<32x8xf32>, vector<8x128xf32>, vector<32x128xf32> -> vector<32x128xf32>
    %24 = vector.extract_strided_slice %22 {offsets = [0, 0], sizes = [16, 8], strides = [1, 1]} : vector<32x8xf32> to vector<16x8xf32>
    %cst_15 = arith.constant 1.000000e-30 : f32
    %25 = vector.broadcast %cst_15 : f32 to vector<16x8xf32>
    %26 = arith.maximumf %24, %25 : vector<16x8xf32>
    %27 = vector.extract_strided_slice %22 {offsets = [16, 0], sizes = [16, 8], strides = [1, 1]} : vector<32x8xf32> to vector<16x8xf32>
    %28 = vector.extract_strided_slice %23 {offsets = [0, 0], sizes = [16, 128], strides = [1, 1]} : vector<32x128xf32> to vector<16x128xf32>
    %cst_16 = arith.constant 1.000000e-30 : f32
    %29 = vector.broadcast %cst_16 : f32 to vector<16x128xf32>
    %30 = arith.maximumf %28, %29 : vector<16x128xf32>
    %31 = vector.extract_strided_slice %23 {offsets = [16, 0], sizes = [16, 128], strides = [1, 1]} : vector<32x128xf32> to vector<16x128xf32>
    %cst_17 = arith.constant 1.000000e+00 : f32
    %32 = vector.broadcast %cst_17 : f32 to vector<16x128xf32>
    %33 = arith.divf %32, %30 : vector<16x128xf32>
    %34 = arith.mulf %19, %33 : vector<16x128xf32>
    %35 = arith.mulf %31, %33 : vector<16x128xf32>
    %36 = arith.subf %13, %35 : vector<16x128xf32>
    %37 = arith.mulf %34, %36 : vector<16x128xf32>
    %cst_18 = arith.constant 0.000000e+00 : f32
    %38 = vector.broadcast %cst_18 : f32 to vector<16x1xf32>
    %39 = arith.subf %38, %16 : vector<16x1xf32>
    %40 = math.exp %39 : vector<16x1xf32>
    %41 = vector.broadcast %40 : vector<16x1xf32> to vector<16x8xf32>
    %42 = arith.mulf %27, %41 : vector<16x8xf32>
    %cst_19 = arith.constant 0.000000e+00 : f32
    %43 = vector.broadcast %cst_19 : f32 to vector<16x8xf32>
    %44 = arith.subf %43, %42 : vector<16x8xf32>
    %45 = arith.mulf %26, %26 : vector<16x8xf32>
    %46 = arith.divf %44, %45 : vector<16x8xf32>
    %47 = tpu.concatenate %37, %46 in 1 : vector<16x128xf32>, vector<16x8xf32> -> vector<16x136xf32>
    %cst_20 = arith.constant dense<0.000000e+00> : vector<16x16xf32>
    %48 = tpu.matmul %47, %47, %cst_20 {dimension_numbers = #tpu.dot_dimension_numbers<[1], [1], [0], [0], [0, 0, 1, 0], [], []>} : vector<16x136xf32>, vector<16x136xf32>, vector<16x16xf32> -> vector<16x16xf32>
    %49 = vector.extract_strided_slice %48 {offsets = [0, 0], sizes = [8, 8], strides = [1, 1]} : vector<16x16xf32> to vector<8x8xf32>
    %c0_21 = arith.constant 0 : index
    %c0_22 = arith.constant 0 : index
    %c0_23 = arith.constant 0 : index
    %50 = vector.load %arg5[%c0_21, %c0_22, %c0_23] : memref<2x8x8xf32, #tpu.memory_space<vmem>>, vector<1x8x8xf32>
    %51 = vector.shape_cast %50 : vector<1x8x8xf32> to vector<8x8xf32>
    %52 = vector.shape_cast %49 : vector<8x8xf32> to vector<1x8x8xf32>
    tpu.vector_store %arg5[%c0_21, %c0_22, %c0_23], %52 {strides = array<i32>} : memref<2x8x8xf32, #tpu.memory_space<vmem>>, vector<1x8x8xf32>,
    %53 = vector.extract_strided_slice %48 {offsets = [8, 8], sizes = [8, 8], strides = [1, 1]} : vector<16x16xf32> to vector<8x8xf32>
    %c1 = arith.constant 1 : index
    %c0_24 = arith.constant 0 : index
    %c0_25 = arith.constant 0 : index
    %54 = vector.load %arg5[%c1, %c0_24, %c0_25] : memref<2x8x8xf32, #tpu.memory_space<vmem>>, vector<1x8x8xf32>
    %55 = vector.shape_cast %54 : vector<1x8x8xf32> to vector<8x8xf32>
    %56 = vector.shape_cast %53 : vector<8x8xf32> to vector<1x8x8xf32>
    tpu.vector_store %arg5[%c1, %c0_24, %c0_25], %56 {strides = array<i32>} : memref<2x8x8xf32, #tpu.memory_space<vmem>>, vector<1x8x8xf32>,
    return
  }
  func.func @transform_0(%arg0: i32) -> (i32, i32) {
    %c0_i32 = arith.constant 0 : i32
    %c0_i32_0 = arith.constant 0 : i32
    %c0_i32_1 = arith.constant 0 : i32
    return %c0_i32, %c0_i32_0 : i32, i32
  }
  func.func @transform_1(%arg0: i32) -> (i32, i32) {
    %c0_i32 = arith.constant 0 : i32
    %c0_i32_0 = arith.constant 0 : i32
    %c0_i32_1 = arith.constant 0 : i32
    return %c0_i32, %c0_i32_0 : i32, i32
  }
  func.func @transform_2(%arg0: i32) -> (i32, i32) {
    %c0_i32 = arith.constant 0 : i32
    %c0_i32_0 = arith.constant 0 : i32
    %c0_i32_1 = arith.constant 0 : i32
    return %c0_i32, %c0_i32_0 : i32, i32
  }
  func.func @transform_3(%arg0: i32) -> (i32, i32) {
    %c0_i32 = arith.constant 0 : i32
    %c0_i32_0 = arith.constant 0 : i32
    %c0_i32_1 = arith.constant 0 : i32
    return %c0_i32, %c0_i32_0 : i32, i32
  }
  func.func @transform_4(%arg0: i32) -> (i32, i32, i32) {
    %c0_i32 = arith.constant 0 : i32
    %c0_i32_0 = arith.constant 0 : i32
    %c0_i32_1 = arith.constant 0 : i32
    %c0_i32_2 = arith.constant 0 : i32
    return %c0_i32, %c0_i32_0, %c0_i32_1 : i32, i32, i32
  }
  func.func @transform_5(%arg0: i32) -> (i32, i32) {
    %c0_i32 = arith.constant 0 : i32
    %c0_i32_0 = arith.constant 0 : i32
    %c0_i32_1 = arith.constant 0 : i32
    return %c0_i32, %c0_i32_0 : i32, i32
  }
  func.func @transform_6(%arg0: i32) -> (i32, i32) {
    %c0_i32 = arith.constant 0 : i32
    %c0_i32_0 = arith.constant 0 : i32
    %c0_i32_1 = arith.constant 0 : i32
    return %c0_i32, %c0_i32_0 : i32, i32
  }
}

</mosaic_0001>

<llo_original>
// kernel: tpu_custom_call.1
$region0: #{tpu_custom_call.1}
  #allocation0 [shape = 'u32[]', space=smem, size = 0x4, offset = 0x4, fixed_abs, tag = 'smem constant byte address 0x4 - core index']
  #allocation1 [shape = 'u32[72,128]{1,0:T(1,128)}', space=vmem, size = 0x9000, scoped, tag = 'internal scratch']
  %s0 = inlined_call_operand.vmem [shape: f32[40,8], index: 0, kind: input, shape index: {}]
  %s1 = inlined_call_operand.vmem [shape: f32[8,128], index: 1, kind: input, shape index: {}]
  %s2 = inlined_call_operand.vmem [shape: f32[1,128], index: 2, kind: input, shape index: {}]
  %s3 = inlined_call_operand.vmem [shape: f32[8,128], index: 3, kind: input, shape index: {}]
  %s4 = inlined_call_operand.hbm [shape: f32[2,8,8], index: 4, kind: output, shape index: {0}]
  %s5 = inlined_call_operand.hbm [shape: f32[2,128], index: 5, kind: output, shape index: {1}]
  %s6 = inlined_call_operand.hbm [shape: f32[16,128], index: 6, kind: output, shape index: {2}]
  %7 = xla_tuple %s4, %s5, %s6
  %s8 = sld [smem:[#allocation0]]
  $region42: #{tpu_custom_call.1} parent=0
    _
  %s10 = ssub.s32 1, %s8
  %s11 = scalar_select 0, %s10, %s8
  $region1: #{tpu_custom_call.1} parent=0
    #allocation2 [shape = 'u8[8192]{0}', space=vmem, size = 0x2000, scoped, tag = 'output window, operand 0, single buffered']
    #allocation3 [shape = 's32[1]{0}', space=sflag, size = 0x4, scoped, tag = 'scoped memory for tpu_custom_call.1']
    #allocation4 [shape = 'u8[1024]{0}', space=vmem, size = 0x400, scoped, tag = 'output window, operand 1, single buffered']
    #allocation5 [shape = 's32[1]{0}', space=sflag, size = 0x4, scoped, tag = 'scoped memory for tpu_custom_call.1']
    #allocation6 [shape = 'u8[8192]{0}', space=vmem, size = 0x2000, scoped, tag = 'output window, operand 2, single buffered']
    %12 = vsyncpa [#allocation3], 0
    %13 = vsyncpa [#allocation5], 0
    // Predicated region
    $region2: #{tpu_custom_call.1} parent=1 // pred_check
      _
    $region3: #{tpu_custom_call.1} parent=1 // pred_check_branch
      %15 = sbr.rel (0) target = $region5
    $region4: #{tpu_custom_call.1} parent=1 // pred_region
      _
    $region5: #{tpu_custom_call.1} parent=1 // pred_fallthru
      _
    // Predicated region
    $region6: #{tpu_custom_call.1} parent=1 // pred_check
      _
    $region7: #{tpu_custom_call.1} parent=1 // pred_check_branch
      %17 = sbr.rel (0) target = $region9
    $region8: #{tpu_custom_call.1} parent=1 // pred_region
      _
    $region9: #{tpu_custom_call.1} parent=1 // pred_fallthru
      _
    // Predicated region
    $region10: #{tpu_custom_call.1} parent=1 // pred_check
      _
    $region11: #{tpu_custom_call.1} parent=1 // pred_check_branch
      %19 = sbr.rel (0) target = $region13
    $region12: #{tpu_custom_call.1} parent=1 // pred_region
      _
    $region13: #{tpu_custom_call.1} parent=1 // pred_fallthru
      _
    // Predicated region
    $region14: #{tpu_custom_call.1} parent=1 // pred_check
      _
    $region15: #{tpu_custom_call.1} parent=1 // pred_check_branch
      %21 = sbr.rel (0) target = $region17
    $region16: #{tpu_custom_call.1} parent=1 // pred_region
      _
    $region17: #{tpu_custom_call.1} parent=1 // pred_fallthru
      _
    %v22 = vld [vmem:[%s1] sm:$0xff]
    %v23 = vld [vmem:[%s2] sm:$0x1]
    %v24 = vld [vmem:[%s3] sm:$0xff]
    %v25 = vld [vmem:[%s0] sm:$0xff]
    %v26 = vld [vmem:[%s0 + $0x8] sm:$0xff]
    %v27 = vld [vmem:[%s0 + $0x10] sm:$0xff]
    %v28 = vld [vmem:[%s0 + $0x18] sm:$0xff]
    %v29 = vld [vmem:[%s0 + $0x20] sm:$0xff]
    %v31 = vperm.slane %v23, 0
    %vm33 = vcmask 64512
    %v35 = vsel %vm33, %v25, 0
    %v38 = vsel %vm33, %v26, 0
    %v41 = vsel %vm33, %v27, 0
    %v44 = vsel %vm33, %v28, 0
    %v47 = vsel %vm33, %v29, 0
    %49 = vmatpush.msra.mxu0 0.0
    %50 = vmatpush.msra.mxu0 0.0
    %51 = vmatpush.msra.mxu0 0.0
    %52 = vmatpush.msra.mxu0 0.0
    %53 = vmatpush.msra.mxu0 0.0
    %54 = vmatpush.msra.mxu0 0.0
    %55 = vmatpush.msra.mxu0 0.0
    %56 = vmatpush.msra.mxu0 0.0
    %57 = vmatpush.msra.mxu0 0.0
    %58 = vmatpush.msra.mxu0 0.0
    %59 = vmatpush.msra.mxu0 0.0
    %60 = vmatpush.msra.mxu0 0.0
    %61 = vmatpush.msra.mxu0 0.0
    %62 = vmatpush.msra.mxu0 0.0
    %63 = vmatpush.msra.mxu0 0.0
    %64 = vmatpush.msra.mxu0 %v22
    %65 = vmatmul.f32.gmra.mxu0 %v35
    %v66 = vpop.f32.mrf.mxu0
    %v67 = vadd.f32 %v31, %v66
    %68 = vmatmul.f32.gmra.mxu0 %v38
    %v69 = vpop.f32.mrf.mxu0
    %v70 = vadd.f32 %v31, %v69
    %71 = vmatmul.f32.gmra.mxu0 %v41
    %v72 = vpop.f32.mrf.mxu0
    %v73 = vadd.f32 %v31, %v72
    %74 = vmatmul.f32.gmra.mxu0 %v44
    %v75 = vpop.f32.mrf.mxu0
    %v76 = vadd.f32 %v31, %v75
    %77 = vmatmul.f32.gmra.mxu0 %v47
    %v78 = vpop.f32.mrf.mxu0
    %v79 = vadd.f32 %v31, %v78
    %80 = vdwg.mxu0
    %81 = vst [vmem:[#allocation4] sm:$0x3] %v67
    %v82 = vsub.f32 %v70, %v76
    %v83 = vsub.f32 %v73, %v79
    %v84 = vmul.f32 %v82, 10000.0
    %v85 = vmul.f32 %v83, 10000.0
    %86 = vst [vmem:[#allocation6] sm:$0xff] %v84
    %87 = vst [vmem:[#allocation6 + $0x8] sm:$0xff] %v85
    %88 = vmax.xlane.f32.xlu0 %v76
    %v89 = vpop.xlane.xlu0 %88
    %90 = vmax.xlane.f32.xlu0 %v79
    %v91 = vpop.xlane.xlu0 %90
    %v92 = vsub.f32 %v76, %v89
    %v93 = vsub.f32 %v79, %v91
    %v94 = vmul.f32 %v92, 1.442695
    %v95 = vpow.pop %v94
    %v96 = vmul.f32 %v93, 1.442695
    %v97 = vpow.pop %v96
    %v98 = vmul.f32 %v84, %v95
    %v99 = vmul.f32 %v85, %v97
    %100 = vmatpush.xpose.msra.mxu0 0.0
    %101 = vmatpush.xpose.msra.mxu0 0.0
    %102 = vmatpush.xpose.msra.mxu0 0.0
    %103 = vmatpush.xpose.msra.mxu0 0.0
    %104 = vmatpush.xpose.msra.mxu0 0.0
    %105 = vmatpush.xpose.msra.mxu0 0.0
    %106 = vmatpush.xpose.msra.mxu0 0.0
    %107 = vmatpush.xpose.msra.mxu0 0.0
    %108 = vmatpush.xpose.msra.mxu0 0.0
    %109 = vmatpush.xpose.msra.mxu0 0.0
    %110 = vmatpush.xpose.msra.mxu0 0.0
    %111 = vmatpush.xpose.msra.mxu0 0.0
    %112 = vmatpush.xpose.msra.mxu0 0.0
    %113 = vmatpush.xpose.msra.mxu0 0.0
    %114 = vmatpush.xpose.msra.mxu0 0.0
    %115 = vmatpush.xpose.msra.mxu0 %v24
    %116 = vmatmul.f32.gmra.mxu0 %v95
    %v117 = vpop.f32.mrf.mxu0
    %v118 = vadd.f32 0.0, %v117
    %119 = vmatmul.f32.gmra.mxu0 %v97
    %v120 = vpop.f32.mrf.mxu0
    %v121 = vadd.f32 0.0, %v120
    %122 = vmatmul.f32.gmra.mxu0 %v98
    %v123 = vpop.f32.mrf.mxu0
    %v124 = vadd.f32 0.0, %v123
    %125 = vmatmul.f32.gmra.mxu0 %v99
    %v126 = vpop.f32.mrf.mxu0
    %v127 = vadd.f32 0.0, %v126
    %128 = vdwg.mxu0
    %v130 = vsel %vm33, %v118, 0
    %v133 = vsel %vm33, %v121, 0
    %v136 = vsel %vm33, %v124, 0
    %v139 = vsel %vm33, %v127, 0
    %141 = vmatpush.msra.mxu0 0.0
    %142 = vmatpush.msra.mxu0 0.0
    %143 = vmatpush.msra.mxu0 0.0
    %144 = vmatpush.msra.mxu0 0.0
    %145 = vmatpush.msra.mxu0 0.0
    %146 = vmatpush.msra.mxu0 0.0
    %147 = vmatpush.msra.mxu0 0.0
    %148 = vmatpush.msra.mxu0 0.0
    %149 = vmatpush.msra.mxu0 0.0
    %150 = vmatpush.msra.mxu0 0.0
    %151 = vmatpush.msra.mxu0 0.0
    %152 = vmatpush.msra.mxu0 0.0
    %153 = vmatpush.msra.mxu0 0.0
    %154 = vmatpush.msra.mxu0 0.0
    %155 = vmatpush.msra.mxu0 0.0
    %156 = vmatpush.msra.mxu0 %v24
    %157 = vmatmul.f32.gmra.mxu0 %v130
    %v158 = vpop.f32.mrf.mxu0
    %v159 = vadd.f32 0.0, %v158
    %160 = vmatmul.f32.gmra.mxu0 %v133
    %v161 = vpop.f32.mrf.mxu0
    %v162 = vadd.f32 0.0, %v161
    %163 = vmatmul.f32.gmra.mxu0 %v136
    %v164 = vpop.f32.mrf.mxu0
    %v165 = vadd.f32 0.0, %v164
    %166 = vmatmul.f32.gmra.mxu0 %v139
    %v167 = vpop.f32.mrf.mxu0
    %v168 = vadd.f32 0.0, %v167
    %169 = vdwg.mxu0
    %v170 = vmax.f32 %v118, 1e-30
    %v171 = vmax.f32 %v121, 1e-30
    %v172 = vmax.f32 %v159, 1e-30
    %v173 = vmax.f32 %v162, 1e-30
    %v174 = vrcp.pop %v172
    %v175 = vmul.f32 %v172, %v174
    %v176 = vsub.f32 1.0, %v175
    %v177 = vmul.f32 %v174, %v176
    %v178 = vadd.f32 %v174, %v177
    %vm179 = vweird.f32 %v172
    %vm180 = vweird.f32 %v174
    %vm181 = vmor %vm179, %vm180
    %v182 = vsel %vm181, %v174, %v178
    %v183 = vand.u32 2147483647, %v172
    %vm184 = vcmp.eq.f32.partialorder %v183, 8.507059e+37
    %v185 = vand.u32 %v172, 2147483648
    %v186 = vor.u32 1.1754944e-38, %v185
    %v187 = vsel %vm184, %v186, %v182
    %v188 = vmul.f32 1.0, %v187
    %v189 = vrcp.pop %v173
    %v190 = vmul.f32 %v173, %v189
    %v191 = vsub.f32 1.0, %v190
    %v192 = vmul.f32 %v189, %v191
    %v193 = vadd.f32 %v189, %v192
    %vm194 = vweird.f32 %v173
    %vm195 = vweird.f32 %v189
    %vm196 = vmor %vm194, %vm195
    %v197 = vsel %vm196, %v189, %v193
    %v198 = vand.u32 2147483647, %v173
    %vm199 = vcmp.eq.f32.partialorder %v198, 8.507059e+37
    %v200 = vand.u32 %v173, 2147483648
    %v201 = vor.u32 1.1754944e-38, %v200
    %v202 = vsel %vm199, %v201, %v197
    %v203 = vmul.f32 1.0, %v202
    %v204 = vmul.f32 %v95, %v188
    %v205 = vmul.f32 %v97, %v203
    %v206 = vmul.f32 %v165, %v188
    %v207 = vmul.f32 %v168, %v203
    %v208 = vsub.f32 %v84, %v206
    %v209 = vsub.f32 %v85, %v207
    %v210 = vmul.f32 %v204, %v208
    %v211 = vmul.f32 %v205, %v209
    %v212 = vsub.f32 0.0, %v89
    %v213 = vsub.f32 0.0, %v91
    %v214 = vmul.f32 %v212, 1.442695
    %v215 = vpow.pop %v214
    %v216 = vmul.f32 %v213, 1.442695
    %v217 = vpow.pop %v216
    %v218 = vmul.f32 %v124, %v215
    %v219 = vmul.f32 %v127, %v217
    %v220 = vsub.f32 0.0, %v218
    %v221 = vsub.f32 0.0, %v219
    %v222 = vmul.f32 %v170, %v170
    %v223 = vmul.f32 %v171, %v171
    %v224 = vrcp.pop %v222
    %v225 = vmul.f32 %v222, %v224
    %v226 = vsub.f32 1.0, %v225
    %v227 = vmul.f32 %v224, %v226
    %v228 = vadd.f32 %v224, %v227
    %vm229 = vweird.f32 %v222
    %vm230 = vweird.f32 %v224
    %vm231 = vmor %vm229, %vm230
    %v232 = vsel %vm231, %v224, %v228
    %v233 = vand.u32 2147483647, %v222
    %vm234 = vcmp.eq.f32.partialorder %v233, 8.507059e+37
    %v235 = vand.u32 %v222, 2147483648
    %v236 = vor.u32 1.1754944e-38, %v235
    %v237 = vsel %vm234, %v236, %v232
    %v238 = vmul.f32 %v220, %v237
    %v239 = vrcp.pop %v223
    %v240 = vmul.f32 %v223, %v239
    %v241 = vsub.f32 1.0, %v240
    %v242 = vmul.f32 %v239, %v241
    %v243 = vadd.f32 %v239, %v242
    %vm244 = vweird.f32 %v223
    %vm245 = vweird.f32 %v239
    %vm246 = vmor %vm244, %vm245
    %v247 = vsel %vm246, %v239, %v243
    %v248 = vand.u32 2147483647, %v223
    %vm249 = vcmp.eq.f32.partialorder %v248, 8.507059e+37
    %v250 = vand.u32 %v223, 2147483648
    %v251 = vor.u32 1.1754944e-38, %v250
    %v252 = vsel %vm249, %v251, %v247
    %v253 = vmul.f32 %v221, %v252
    %v255 = vsel %vm33, %v238, 0
    %v258 = vsel %vm33, %v253, 0
    %260 = vmatpush.xpose.msra.mxu0 0.0
    %261 = vmatpush.xpose.msra.mxu0 0.0
    %262 = vmatpush.xpose.msra.mxu0 0.0
    %263 = vmatpush.xpose.msra.mxu0 0.0
    %264 = vmatpush.xpose.msra.mxu0 0.0
    %265 = vmatpush.xpose.msra.mxu0 0.0
    %266 = vmatpush.xpose.msra.mxu0 0.0
    %267 = vmatpush.xpose.msra.mxu0 0.0
    %268 = vmatpush.xpose.msra.mxu0 0.0
    %269 = vmatpush.xpose.msra.mxu0 0.0
    %270 = vmatpush.xpose.msra.mxu0 0.0
    %271 = vmatpush.xpose.msra.mxu0 0.0
    %272 = vmatpush.xpose.msra.mxu0 0.0
    %273 = vmatpush.xpose.msra.mxu0 0.0
    %274 = vmatpush.xpose.msra.mxu0 %v211
    %275 = vmatpush.xpose.msra.mxu0 %v210
    %276 = vmatmul.f32.gmra.mxu0 %v210
    %v277 = vpop.f32.mrf.mxu0
    %v278 = vadd.f32 0.0, %v277
    %279 = vmatmul.f32.gmra.mxu0 %v211
    %v280 = vpop.f32.mrf.mxu0
    %v281 = vadd.f32 0.0, %v280
    %282 = vdwg.mxu0
    %283 = vmatpush.xpose.msra.mxu0 0.0
    %284 = vmatpush.xpose.msra.mxu0 0.0
    %285 = vmatpush.xpose.msra.mxu0 0.0
    %286 = vmatpush.xpose.msra.mxu0 0.0
    %287 = vmatpush.xpose.msra.mxu0 0.0
    %288 = vmatpush.xpose.msra.mxu0 0.0
    %289 = vmatpush.xpose.msra.mxu0 0.0
    %290 = vmatpush.xpose.msra.mxu0 0.0
    %291 = vmatpush.xpose.msra.mxu0 0.0
    %292 = vmatpush.xpose.msra.mxu0 0.0
    %293 = vmatpush.xpose.msra.mxu0 0.0
    %294 = vmatpush.xpose.msra.mxu0 0.0
    %295 = vmatpush.xpose.msra.mxu0 0.0
    %296 = vmatpush.xpose.msra.mxu0 0.0
    %297 = vmatpush.xpose.msra.mxu0 %v258
    %298 = vmatpush.xpose.msra.mxu0 %v255
    %299 = vmatmul.f32.gmra.mxu0 %v255
    %v300 = vpop.f32.mrf.mxu0
    %v301 = vadd.f32 %v278, %v300
    %302 = vmatmul.f32.gmra.mxu0 %v258
    %v303 = vpop.f32.mrf.mxu0
    %v304 = vadd.f32 %v281, %v303
    %305 = vdwg.mxu0
    %306 = vst.msk [vmem:[#allocation2] sm:$0xff] %vm33, %v301
    %308 = vrot.lane.b32.xlu0 %v304, 120
    %v309 = vpop.permute.xlu0 %308
    %s311 = scalar_lea.vmem [#allocation2], 8
    %312 = vst.msk [vmem:[%s311] sm:$0xff] %vm33, %v309
    // Predicated region
    $region18: #{tpu_custom_call.1} parent=1 // pred_check
      _
    $region19: #{tpu_custom_call.1} parent=1 // pred_check_branch
      %314 = sbr.rel (0) target = $region21
    $region20: #{tpu_custom_call.1} parent=1 // pred_region
      %316 = vsyncadd [#allocation3], 0
      %s317 = sshll.u32 [#allocation2], 4
      %s318 = int_to_ptr.vmem [resolvable:$true] %s317
      %s319 = sshll.u32 %s4, 4
      %s320 = int_to_ptr.hbm [resolvable:$true] %s319
      %325 = dma.vmem_to_hbm [thread:$0]  %s318, 256, %s320, [#allocation3], 128, 128, 8
    $region21: #{tpu_custom_call.1} parent=1 // pred_fallthru
      _
    // Predicated region
    $region22: #{tpu_custom_call.1} parent=1 // pred_check
      _
    $region23: #{tpu_custom_call.1} parent=1 // pred_check_branch
      %327 = sbr.rel (0) target = $region25
    $region24: #{tpu_custom_call.1} parent=1 // pred_region
      %329 = vsyncadd [#allocation5], 0
      %s331 = sshll.u32 [#allocation4], 4
      %s332 = int_to_ptr.vmem [resolvable:$true] %s331
      %s333 = sshll.u32 %s5, 4
      %s334 = int_to_ptr.hbm [resolvable:$true] %s333
      %336 = dma.vmem_to_hbm [thread:$0]  %s332, 32, %s334, [#allocation5]
    $region25: #{tpu_custom_call.1} parent=1 // pred_fallthru
      _
    // Predicated region
    $region26: #{tpu_custom_call.1} parent=1 // pred_check
      _
    $region27: #{tpu_custom_call.1} parent=1 // pred_check_branch
      %338 = sbr.rel (0) target = $region29
    $region28: #{tpu_custom_call.1} parent=1 // pred_region
      %340 = vsyncadd [#allocation5], 0
      %s341 = sshll.u32 [#allocation6], 4
      %s342 = int_to_ptr.vmem [resolvable:$true] %s341
      %s343 = sshll.u32 %s6, 4
      %s344 = int_to_ptr.hbm [resolvable:$true] %s343
      %349 = dma.vmem_to_hbm [thread:$0]  %s342, 256, %s344, [#allocation5], 128, 128, 8
    $region29: #{tpu_custom_call.1} parent=1 // pred_fallthru
      _
    // Predicated region
    $region30: #{tpu_custom_call.1} parent=1 // pred_check
      _
    $region31: #{tpu_custom_call.1} parent=1 // pred_check_branch
      %351 = sbr.rel (0) target = $region33
    $region32: #{tpu_custom_call.1} parent=1 // pred_region
      %353 = dma.done [#allocation3], 256
    $region33: #{tpu_custom_call.1} parent=1 // pred_fallthru
      _
    // Predicated region
    $region34: #{tpu_custom_call.1} parent=1 // pred_check
      _
    $region35: #{tpu_custom_call.1} parent=1 // pred_check_branch
      %355 = sbr.rel (0) target = $region37
    $region36: #{tpu_custom_call.1} parent=1 // pred_region
      %357 = dma.done [#allocation5], 32
    $region37: #{tpu_custom_call.1} parent=1 // pred_fallthru
      _
    // Predicated region
    $region38: #{tpu_custom_call.1} parent=1 // pred_check
      _
    $region39: #{tpu_custom_call.1} parent=1 // pred_check_branch
      %359 = sbr.rel (0) target = $region41
    $region40: #{tpu_custom_call.1} parent=1 // pred_region
      %361 = dma.done [#allocation5], 256
    $region41: #{tpu_custom_call.1} parent=1 // pred_fallthru
      _
    %362 = vsyncpa [#allocation3], 1
    %363 = vsyncpa [#allocation5], 1

</llo_original>
